<compile_context>
chip_gen: v7x
topology: tpu7x:2x2x1
jax: 0.10.0
libtpu: 0.0.40
codegen_flags: <defaults>
</compile_context>

<pallas_src>
import functools

import jax
import jax.numpy as jnp
from jax.experimental import pallas as pl
from jax.experimental.pallas import tpu as pltpu


def _round_up(x, m):
    return ((x + m - 1) // m) * m


# -----------------------------------------------------------------------------
# Hoisted KV projection: kv = e @ Wkv + bkv (once per edge).
# -----------------------------------------------------------------------------
def _linear_kernel(x_ref, w_ref, b_ref, o_ref):
    o_ref[...] = (jnp.dot(x_ref[...], w_ref[...],
                          preferred_element_type=jnp.float32)
                  + b_ref[...]).astype(o_ref.dtype)


def linear_pallas(x, w, b, *, block_m, out_dtype, vmem_limit_bytes):
    M, K = x.shape
    N = w.shape[1]
    return pl.pallas_call(
        _linear_kernel,
        out_shape=jax.ShapeDtypeStruct((M, N), out_dtype),
        grid_spec=pltpu.PrefetchScalarGridSpec(
            num_scalar_prefetch=0,
            grid=(M // block_m,),
            in_specs=[
                pl.BlockSpec((block_m, K), lambda m: (m, 0)),
                pl.BlockSpec((K, N), lambda m: (0, 0)),
                pl.BlockSpec((1, N), lambda m: (0, 0)),
            ],
            out_specs=pl.BlockSpec((block_m, N), lambda m: (m, 0))),
        compiler_params=pltpu.CompilerParams(
            dimension_semantics=("parallel",),
            vmem_limit_bytes=vmem_limit_bytes),
    )(x, w, b)


# -----------------------------------------------------------------------------
# Main cross-attention kernel: flash-style online softmax over edge tiles.
# -----------------------------------------------------------------------------
def cross_attention_kernel(counts_ref,                     # SMEM [num_i, num_j]
                           dst_ref, h_ref, kv_ref,
                           wq_ref, bq_ref, wp_ref, bp_ref,
                           out_ref,
                           q_scr, m_scr, l_scr, acc_scr,
                           *, num_heads, head_dim, compute_dtype, exp_dtype):
    i = pl.program_id(0)          # node tile  (parallel)
    j = pl.program_id(1)          # edge tile  (reduction)
    dim = num_heads * head_dim
    block_n = h_ref.shape[0]
    block_e = kv_ref.shape[0]
    cd = compute_dtype
    use_f32_exp = jnp.dtype(exp_dtype) == jnp.dtype(jnp.float32)

    # ---- init (once per node tile): project q (scale pre-folded into Wq/bq by
    #      the wrapper), reset online-softmax state. ----
    @pl.when(j == 0)
    def _init():
        q = jnp.dot(h_ref[...], wq_ref[...],
                    preferred_element_type=jnp.float32) + bq_ref[...]
        q_scr[...] = q.astype(cd)
        m_scr[...] = jnp.full_like(m_scr, -1e30)
        l_scr[...] = jnp.zeros_like(l_scr)
        acc_scr[...] = jnp.zeros_like(acc_scr)

    # ---- online softmax update; skipped entirely when this edge tile holds no
    #      edge pointing into this node tile (edges are pre-sorted by dst, so
    #      most (i, j) pairs are empty). ----
    @pl.when(counts_ref[i, j] > 0)
    def _compute():
        row_ids = (jax.lax.broadcasted_iota(jnp.int32, (block_n, block_e), 0)
                   + i * block_n)
        mask = (row_ids == dst_ref[...]).astype(jnp.float32)      # [tN, tE]
        neg_bias = (mask - 1.0) * 1e30                            # 0 valid / -1e30 masked

        for hd in range(num_heads):                               # static unroll
            ks = slice(hd * head_dim, (hd + 1) * head_dim)        # k / q / acc cols
            vs = slice(dim + hd * head_dim, dim + (hd + 1) * head_dim)  # v cols

            # logits = q_h @ k_h^T  (contract over head_dim; no transpose copy)
            logits = jax.lax.dot_general(
                q_scr[:, ks], kv_ref[:, ks],
                (((1,), (1,)), ((), ())),
                preferred_element_type=jnp.float32) + neg_bias    # [tN, tE]

            m_prev = m_scr[:, hd:hd + 1]
            m_new = jnp.maximum(m_prev, jnp.max(logits, axis=-1, keepdims=True))
            alpha = jnp.exp(m_prev - m_new)
            if use_f32_exp:
                p = jnp.exp(logits - m_new) * mask
            else:   # bf16 exp: worthwhile on v6e/v7x (bf16 EUP); keep f32 on v5e
                p = jnp.exp((logits - m_new).astype(exp_dtype)).astype(jnp.float32) * mask

            l_scr[:, hd:hd + 1] = (alpha * l_scr[:, hd:hd + 1]
                                   + jnp.sum(p, axis=-1, keepdims=True))
            pv = jnp.dot(p.astype(cd), kv_ref[:, vs],
                         preferred_element_type=jnp.float32)      # [tN, Dh]
            acc_scr[:, ks] = alpha * acc_scr[:, ks] + pv
            m_scr[:, hd:hd + 1] = m_new

    # ---- finalize (last edge tile): deferred normalization + output projection ----
    @pl.when(j == pl.num_programs(1) - 1)
    def _finalize():
        l = jnp.maximum(l_scr[...], 1e-30)      # zero-in-edge nodes -> out = bp
        inv_l = pl.reciprocal(l, approx=True)
        inv_l = inv_l * (2.0 - l * inv_l)       # one Newton step -> ~f32 accurate
        for hd in range(num_heads):
            ks = slice(hd * head_dim, (hd + 1) * head_dim)
            acc_scr[:, ks] = acc_scr[:, ks] * inv_l[:, hd:hd + 1]
        out_ref[...] = (jnp.dot(acc_scr[...].astype(cd), wp_ref[...],
                                preferred_element_type=jnp.float32)
                        + bp_ref[...]).astype(out_ref.dtype)


def cross_attention(h, e, dst, params, num_heads, *,
                    block_n=256, block_e=1024,
                    compute_dtype=jnp.bfloat16,
                    exp_dtype=jnp.float32,
                    vmem_limit_bytes=48 * 1024 * 1024):
    """Forward pass of the DGL CrossAttention module.

    Generation tuning notes:
      * v5e / v6e (128 MiB VMEM): raise block_e to 2048-4096 and
        vmem_limit_bytes to ~64-100 MiB; keep exp_dtype=f32 on v5e (no bf16 EUP).
      * v6e / v7x: pass exp_dtype=jnp.bfloat16 to roughly halve EUP exp cost.
      * v7x (64 MiB VMEM): keep vmem_limit_bytes <= ~48 MiB.
    """
    N, dim = h.shape
    E = e.shape[0]
    assert dim % num_heads == 0
    head_dim = dim // num_heads
    scale = float(head_dim) ** (-0.5)
    cd = compute_dtype

    block_n = min(_round_up(block_n, 8), _round_up(N, 8))
    block_e = min(_round_up(block_e, 128), _round_up(E, 128))
    N_pad = _round_up(N, block_n)
    E_pad = _round_up(E, block_e)
    num_i = N_pad // block_n
    num_j = E_pad // block_e

    # Sort edges by destination so each node tile touches few edge tiles, then
    # pad.  Padded edges get dst = -1 (never matches a row).  Edge permutation
    # does not change the per-node sums.
    dst = dst.astype(jnp.int32)
    order = jnp.argsort(dst)
    e_sorted = e[order]
    dst_sorted = dst[order]
    e_p = jnp.pad(e_sorted, ((0, E_pad - E), (0, 0))).astype(cd)
    dst_p = jnp.pad(dst_sorted, (0, E_pad - E), constant_values=-1)
    h_p = jnp.pad(h, ((0, N_pad - N), (0, 0))).astype(cd)

    # Weights cast once here (not per grid step); softmax scale folded into Wq/bq.
    wq = (params["wq"] * scale).astype(cd)
    bq = (params["bq"] * scale).astype(jnp.float32)
    wkv = params["wkv"].astype(cd)
    bkv = params["bkv"].astype(jnp.float32)
    wp = params["wp"].astype(cd)
    bp = params["bp"].astype(jnp.float32)

    # Hoisted KV projection: once per edge, not once per (node tile, edge tile).
    kv = linear_pallas(e_p, wkv, bkv, block_m=block_e, out_dtype=cd,
                       vmem_limit_bytes=vmem_limit_bytes)          # [E_pad, 2*dim]

    # Per-(node tile, edge tile) relevant-edge counts -> scalar prefetch (SMEM).
    # (For very large graphs, compute this with a segment_sum instead.)
    dst_tile = jnp.where(dst_p >= 0, dst_p // block_n, -1).reshape(num_j, block_e)
    counts = jnp.sum(dst_tile[None, :, :] == jnp.arange(num_i)[:, None, None],
                     axis=-1).astype(jnp.int32)                    # [num_i, num_j]

    dst2d = dst_p.reshape(1, E_pad)

    kernel = functools.partial(
        cross_attention_kernel,
        num_heads=num_heads, head_dim=head_dim,
        compute_dtype=cd, exp_dtype=exp_dtype)

    out = pl.pallas_call(
        kernel,
        out_shape=jax.ShapeDtypeStruct((N_pad, dim), h.dtype),
        grid_spec=pltpu.PrefetchScalarGridSpec(
            num_scalar_prefetch=1,
            grid=(num_i, num_j),
            in_specs=[
                pl.BlockSpec((1, block_e), lambda i, j, c: (0, j)),        # dst ids
                pl.BlockSpec((block_n, dim), lambda i, j, c: (i, 0)),      # h tile
                pl.BlockSpec((block_e, 2 * dim), lambda i, j, c: (j, 0)),  # [k|v] tile
                pl.BlockSpec((dim, dim), lambda i, j, c: (0, 0)),          # wq (pre-scaled)
                pl.BlockSpec((1, dim), lambda i, j, c: (0, 0)),            # bq (pre-scaled)
                pl.BlockSpec((dim, dim), lambda i, j, c: (0, 0)),          # wp
                pl.BlockSpec((1, dim), lambda i, j, c: (0, 0)),            # bp
            ],
            out_specs=pl.BlockSpec((block_n, dim), lambda i, j, c: (i, 0)),
            scratch_shapes=[
                pltpu.VMEM((block_n, dim), cd),                  # cached, scaled q
                pltpu.VMEM((block_n, num_heads), jnp.float32),   # running max  m
                pltpu.VMEM((block_n, num_heads), jnp.float32),   # running sum  l
                pltpu.VMEM((block_n, dim), jnp.float32),         # output accumulator
            ]),
        compiler_params=pltpu.CompilerParams(
            dimension_semantics=("parallel", "arbitrary"),
            vmem_limit_bytes=vmem_limit_bytes),
    )(counts, dst2d, h_p, kv, wq, bq, wp, bp)

    return out[:N]


def reference_forward(h, e, dst, params, num_heads):
    """Pure-JAX reference matching the DGL semantics exactly (segment ops)."""
    N, dim = h.shape
    head_dim = dim // num_heads
    scale = float(head_dim) ** (-0.5)
    with jax.default_matmul_precision("highest"):
        q = h @ params["wq"] + params["bq"]            # [N, D]
        kv = e @ params["wkv"] + params["bkv"]         # [E, 2D]
        k, v = kv[:, :dim], kv[:, dim:]
        qh = q.reshape(N, num_heads, head_dim)
        kh = k.reshape(-1, num_heads, head_dim)
        vh = v.reshape(-1, num_heads, head_dim)
        attn = jnp.einsum("ehd,ehd->eh", qh[dst], kh) * scale      # [E, H]
        m = jax.ops.segment_max(attn, dst, num_segments=N)         # [N, H]
        p = jnp.exp(attn - m[dst])
        s = jax.ops.segment_sum(p, dst, num_segments=N)            # [N, H]
        alpha = p / s[dst]
        msg = alpha[:, :, None] * vh                               # [E, H, Dh]
        agg = jax.ops.segment_sum(msg, dst, num_segments=N).reshape(N, dim)
        return agg @ params["wp"] + params["bp"]


if __name__ == "__main__":
    # Small deterministic problem.  head_dim = 128 keeps per-head column slices
    # lane-aligned; block_n=8 / block_e=128 give a real 2x2 grid so both the
    # online-softmax accumulation across edge tiles and the zero-count tile-skip
    # path are exercised.
    N, E, DIM, HEADS = 16, 256, 256, 2
    key = jax.random.PRNGKey(0)
    keys = jax.random.split(key, 10)

    h = jax.random.normal(keys[0], (N, DIM), dtype=jnp.float32)
    e = jax.random.normal(keys[1], (E, DIM), dtype=jnp.float32)
    # Every node gets >= 1 incoming edge (edge_softmax defined everywhere); the
    # remaining edges are skewed to the upper node-id half so that at least one
    # (node tile, edge tile) pair has zero relevant edges (skip path tested).
    dst = jnp.concatenate(
        [jnp.arange(N, dtype=jnp.int32),
         jax.random.randint(keys[2], (E - N,), N // 2, N, dtype=jnp.int32)])

    # nn.Linear parameters, stored pre-transposed as [in, out]; use_bias=True.
    params = {
        "wq":  0.02 * jax.random.normal(keys[3], (DIM, DIM), dtype=jnp.float32),
        "bq":  0.02 * jax.random.normal(keys[4], (1, DIM), dtype=jnp.float32),
        "wkv": 0.02 * jax.random.normal(keys[5], (DIM, 2 * DIM), dtype=jnp.float32),
        "bkv": 0.02 * jax.random.normal(keys[6], (1, 2 * DIM), dtype=jnp.float32),
        "wp":  0.02 * jax.random.normal(keys[7], (DIM, DIM), dtype=jnp.float32),
        "bp":  0.02 * jax.random.normal(keys[8], (1, DIM), dtype=jnp.float32),
    }

    ref = reference_forward(h, e, dst, params, HEADS)

    # f32 compute path: validates the algorithm with a tight-ish tolerance.
    out_f32 = cross_attention(h, e, dst, params, HEADS,
                              block_n=8, block_e=128,
                              compute_dtype=jnp.float32)
    out_f32 = jax.block_until_ready(out_f32)
    assert out_f32.shape == (N, DIM)
    assert jnp.allclose(out_f32, ref, rtol=5e-3, atol=5e-3), (
        f"f32 max abs diff {jnp.max(jnp.abs(out_f32 - ref))}")

    # Default bf16-MXU path (throughput path on v5e/v6e/v7x) — looser tolerance.
    out_bf16 = cross_attention(h, e, dst, params, HEADS,
                               block_n=8, block_e=128)
    out_bf16 = jax.block_until_ready(out_bf16)
    assert jnp.allclose(out_bf16, ref, rtol=5e-2, atol=5e-2), (
        f"bf16 max abs diff {jnp.max(jnp.abs(out_bf16 - ref))}")

    print("KERNEL_OK")
</pallas_src>

<mosaic_0001>
module attributes {stable_mosaic.version = 11 : i64} {
  func.func @_linear_kernel(%arg0: i32, %arg1: memref<128x256xf32, #tpu.memory_space<vmem>>, %arg2: memref<256x512xf32, #tpu.memory_space<vmem>>, %arg3: memref<1x512xf32, #tpu.memory_space<vmem>>, %arg4: memref<128x512xf32, #tpu.memory_space<vmem>>) attributes {dimension_semantics = [#tpu.dimension_semantics<parallel>], iteration_bounds = array<i64: 2>, scalar_prefetch = 0 : i64, scratch_operands = 0 : i64, tpu.core_type = #tpu.core_type<tc>, window_params = [{transform_indices = @transform_0, window_bounds = array<i64: 128, 256>}, {pipeline_mode = #tpu.pipeline_mode<synchronous>, transform_indices = @transform_1, window_bounds = array<i64: 256, 512>}, {pipeline_mode = #tpu.pipeline_mode<synchronous>, transform_indices = @transform_2, window_bounds = array<i64: 1, 512>}, {transform_indices = @transform_3, window_bounds = array<i64: 128, 512>}]} {
    %c0 = arith.constant 0 : index
    %c0_0 = arith.constant 0 : index
    %0 = vector.load %arg1[%c0, %c0_0] : memref<128x256xf32, #tpu.memory_space<vmem>>, vector<128x256xf32>
    %c0_1 = arith.constant 0 : index
    %c0_2 = arith.constant 0 : index
    %1 = vector.load %arg2[%c0_1, %c0_2] : memref<256x512xf32, #tpu.memory_space<vmem>>, vector<256x512xf32>
    %cst = arith.constant dense<0.000000e+00> : vector<128x512xf32>
    %2 = tpu.matmul %0, %1, %cst {dimension_numbers = #tpu.dot_dimension_numbers<[1], [0], [0], [1], [0, 0, 1, 1], [], []>} : vector<128x256xf32>, vector<256x512xf32>, vector<128x512xf32> -> vector<128x512xf32>
    %c0_3 = arith.constant 0 : index
    %c0_4 = arith.constant 0 : index
    %3 = vector.load %arg3[%c0_3, %c0_4] : memref<1x512xf32, #tpu.memory_space<vmem>>, vector<1x512xf32>
    %4 = vector.broadcast %3 : vector<1x512xf32> to vector<128x512xf32>
    %5 = arith.addf %2, %4 : vector<128x512xf32>
    %c0_5 = arith.constant 0 : index
    %c0_6 = arith.constant 0 : index
    %6 = vector.load %arg4[%c0_5, %c0_6] : memref<128x512xf32, #tpu.memory_space<vmem>>, vector<128x512xf32>
    tpu.vector_store %arg4[%c0_5, %c0_6], %5 {strides = array<i32>} : memref<128x512xf32, #tpu.memory_space<vmem>>, vector<128x512xf32>,
    return
  }
  func.func @transform_0(%arg0: i32) -> (i32, i32) {
    %c0_i32 = arith.constant 0 : i32
    %c0_i32_0 = arith.constant 0 : i32
    return %arg0, %c0_i32 : i32, i32
  }
  func.func @transform_1(%arg0: i32) -> (i32, i32) {
    %c0_i32 = arith.constant 0 : i32
    %c0_i32_0 = arith.constant 0 : i32
    %c0_i32_1 = arith.constant 0 : i32
    return %c0_i32, %c0_i32_0 : i32, i32
  }
  func.func @transform_2(%arg0: i32) -> (i32, i32) {
    %c0_i32 = arith.constant 0 : i32
    %c0_i32_0 = arith.constant 0 : i32
    %c0_i32_1 = arith.constant 0 : i32
    return %c0_i32, %c0_i32_0 : i32, i32
  }
  func.func @transform_3(%arg0: i32) -> (i32, i32) {
    %c0_i32 = arith.constant 0 : i32
    %c0_i32_0 = arith.constant 0 : i32
    return %arg0, %c0_i32 : i32, i32
  }
}

</mosaic_0001>

<llo_original>
// kernel: tpu_custom_call.1
$region0: #{tpu_custom_call.1}
  #allocation0 [shape = 'u32[]', space=smem, size = 0x4, offset = 0x4, fixed_abs, tag = 'smem constant byte address 0x4 - core index']
  #allocation1 [shape = 'u32[144,128]{1,0:T(1,128)}', space=vmem, size = 0x12000, scoped, tag = 'internal scratch']
  %s0 = inlined_call_operand.hbm [shape: f32[256,256], index: 0, kind: input, shape index: {}]
  %s1 = inlined_call_operand.hbm [shape: f32[256,512], index: 1, kind: input, shape index: {}]
  %s2 = inlined_call_operand.vmem [shape: f32[1,512], index: 2, kind: input, shape index: {}]
  %s3 = inlined_call_operand.hbm [shape: f32[256,512], index: 3, kind: output, shape index: {}]
  %s4 = sld [smem:[#allocation0]]
  $region53: #{tpu_custom_call.1} parent=0
    _
  %s6 = ssub.s32 1, %s4
  %s7 = scalar_select 0, %s6, %s4
  $region1: #{tpu_custom_call.1} parent=0
    #allocation2 [shape = 'u8[262144]{0}', space=vmem, size = 0x40000, scoped, tag = 'input window, operand 0']
    #allocation3 [shape = 's32[2]{0}', space=sflag, size = 0x8, scoped, tag = 'scoped memory for tpu_custom_call.1']
    #allocation4 [shape = 's32[2]{0}', space=sflag, size = 0x8, scoped, tag = 'scoped memory for tpu_custom_call.1']
    #allocation5 [shape = 'u8[524288]{0}', space=vmem, size = 0x80000, scoped, tag = 'input window, operand 1, single buffered']
    #allocation6 [shape = 's32[1]{0}', space=sflag, size = 0x4, scoped, tag = 'scoped memory for tpu_custom_call.1']
    #allocation7 [shape = 'u8[524288]{0}', space=vmem, size = 0x80000, scoped, tag = 'output window, operand 0']
    %8 = vsyncpa [#allocation3], 0
    %s9 = scalar_lea.sflag [#allocation3], 1
    %10 = vsyncpa %s9, 0
    %11 = vsyncpa [#allocation6], 0
    %12 = vsyncpa [#allocation4], 0
    %s13 = scalar_lea.sflag [#allocation4], 1
    %14 = vsyncpa %s13, 0
    loop: start=0, step=1, limit=4
    $region2: #{tpu_custom_call.1} parent=1 // loop_pre_header
      _
    $region3: #{tpu_custom_call.1} parent=1 // loop_header
      %s16 = sphi 0, %s20
      %p17 = scmp.ge.s32.totalorder %s16, 4
      %s26 = sphi 0, %s28
      %s29 = sphi 0, %s26
      %s30 = sphi 0, %s29
      %s46 = sphi 0, %s30
      %s50 = sphi 0, %s50
      %s52 = sphi 0, %s50
      %s53 = sphi 0, %s52
      %s67 = sphi 0, %s53
      %s71 = sphi 0, %s71
      %s73 = sphi 0, %s71
      %s74 = sphi 0, %s73
      %s88 = sphi 0, %s74
      %s94 = sphi 0, %s96
      %s97 = sphi 0, %s94
      %s98 = sphi 0, %s97
      %s114 = sphi 0, %s98
    $region4: #{tpu_custom_call.1} parent=1 // loop_header_branch
      %19 = sbr.rel (%p17) target = $region8
    $region5: #{tpu_custom_call.1} parent=1 // loop_body
      %s21 = ssub.s32 %s16, 1
      %s22 = ssub.s32 %s16, 2
      %s23 = sadd.s32 %s16, 1
      %s24 = ssub.s32 %s16, %s23
      %p25 = scmp.eq.s32.totalorder %s24, 0
      %s27 = sadd.s32 %s26, 1
      %s28 = scalar_select %p25, %s26, %s27
      %p31 = pneg %p25
      %p32 = scmp.eq.s32.totalorder %s16, 1
      %p33 = por %p31, %p32
      %p34 = scmp.ne.s32.totalorder %s26, %s29
      %p35 = scmp.eq.s32.totalorder %s16, 0
      %p36 = por %p34, %p35
      %p37 = scmp.ne.s32.totalorder %s26, %s29
      %p38 = scmp.eq.s32.totalorder %s21, 1
      %p39 = por %p37, %p38
      %p40 = scmp.ne.s32.totalorder %s29, %s30
      %p41 = scmp.eq.s32.totalorder %s21, 0
      %p42 = por %p40, %p41
      %p43 = scmp.ne.s32.totalorder %s29, %s30
      %p44 = scmp.eq.s32.totalorder %s22, 1
      %p45 = por %p43, %p44
      %p47 = scmp.ne.s32.totalorder %s30, %s46
      %p48 = scmp.eq.s32.totalorder %s22, 0
      %p49 = por %p47, %p48
      %s51 = sadd.s32 %s50, 1
      %p54 = scmp.eq.s32.totalorder %s16, 1
      %p55 = scmp.ne.s32.totalorder %s50, %s52
      %p56 = scmp.eq.s32.totalorder %s16, 0
      %p57 = por %p55, %p56
      %p58 = scmp.ne.s32.totalorder %s50, %s52
      %p59 = scmp.eq.s32.totalorder %s21, 1
      %p60 = por %p58, %p59
      %p61 = scmp.ne.s32.totalorder %s52, %s53
      %p62 = scmp.eq.s32.totalorder %s21, 0
      %p63 = por %p61, %p62
      %p64 = scmp.ne.s32.totalorder %s52, %s53
      %p65 = scmp.eq.s32.totalorder %s22, 1
      %p66 = por %p64, %p65
      %p68 = scmp.ne.s32.totalorder %s53, %s67
      %p69 = scmp.eq.s32.totalorder %s22, 0
      %p70 = por %p68, %p69
      %s72 = sadd.s32 %s71, 1
      %p75 = scmp.eq.s32.totalorder %s16, 1
      %p76 = scmp.ne.s32.totalorder %s71, %s73
      %p77 = scmp.eq.s32.totalorder %s16, 0
      %p78 = por %p76, %p77
      %p79 = scmp.ne.s32.totalorder %s71, %s73
      %p80 = scmp.eq.s32.totalorder %s21, 1
      %p81 = por %p79, %p80
      %p82 = scmp.ne.s32.totalorder %s73, %s74
      %p83 = scmp.eq.s32.totalorder %s21, 0
      %p84 = por %p82, %p83
      %p85 = scmp.ne.s32.totalorder %s73, %s74
      %p86 = scmp.eq.s32.totalorder %s22, 1
      %p87 = por %p85, %p86
      %p89 = scmp.ne.s32.totalorder %s74, %s88
      %p90 = scmp.eq.s32.totalorder %s22, 0
      %p91 = por %p89, %p90
      %s92 = ssub.s32 %s16, %s23
      %p93 = scmp.eq.s32.totalorder %s92, 0
      %s95 = sadd.s32 %s94, 1
      %s96 = scalar_select %p93, %s94, %s95
      %p99 = pneg %p93
      %p100 = scmp.eq.s32.totalorder %s16, 1
      %p101 = por %p99, %p100
      %p102 = scmp.ne.s32.totalorder %s94, %s97
      %p103 = scmp.eq.s32.totalorder %s16, 0
      %p104 = por %p102, %p103
      %p105 = scmp.ne.s32.totalorder %s94, %s97
      %p106 = scmp.eq.s32.totalorder %s21, 1
      %p107 = por %p105, %p106
      %p108 = scmp.ne.s32.totalorder %s97, %s98
      %p109 = scmp.eq.s32.totalorder %s21, 0
      %p110 = por %p108, %p109
      %p111 = scmp.ne.s32.totalorder %s97, %s98
      %p112 = scmp.eq.s32.totalorder %s22, 1
      %p113 = por %p111, %p112
      %p115 = scmp.ne.s32.totalorder %s98, %s114
      %p116 = scmp.eq.s32.totalorder %s22, 0
      %p117 = por %p115, %p116
      %p118 = scmp.le.s32.totalorder 1, %s16
      %p119 = scmp.lt.s32.totalorder %s16, 3
      %p120 = pnand %p118, %p119
      %p121 = pneg %p120
      // Predicated region
      $region9: #{tpu_custom_call.1} parent=5 // pred_check
        _
      $region10: #{tpu_custom_call.1} parent=5 // pred_check_branch
        %123 = sbr.rel (%p120) target = $region12
      $region11: #{tpu_custom_call.1} parent=5 // pred_region
        %s124 = ssub.s32 %s16, 1
        // Predicated region
        $region13: #{tpu_custom_call.1} parent=11 // pred_check
          %p125 = pneg %p63
        $region14: #{tpu_custom_call.1} parent=11 // pred_check_branch
          %127 = sbr.rel (%p125) target = $region16
        $region15: #{tpu_custom_call.1} parent=11 // pred_region
          %s129 = ssub.s32 16384, 16384
          %130 = vsyncadd [#allocation6], %s129
          %s131 = sshll.u32 [#allocation5], 4
          %s132 = int_to_ptr.vmem [resolvable:$true] %s131
          %137 = dma.hbm_to_vmem [thread:$0]  %s1, 16384, %s132, [#allocation6], 512, 512, 32
        $region16: #{tpu_custom_call.1} parent=11 // pred_fallthru
          _
        // Predicated region
        $region17: #{tpu_custom_call.1} parent=11 // pred_check
          %p138 = pneg %p84
        $region18: #{tpu_custom_call.1} parent=11 // pred_check_branch
          %140 = sbr.rel (%p138) target = $region20
        $region19: #{tpu_custom_call.1} parent=11 // pred_region
          _
        $region20: #{tpu_custom_call.1} parent=11 // pred_fallthru
          _
      $region12: #{tpu_custom_call.1} parent=5 // pred_fallthru
        _
      %p141 = scmp.lt.s32.totalorder %s16, 2
      // Predicated region
      $region21: #{tpu_custom_call.1} parent=5 // pred_check
        %p142 = pneg %p141
      $region22: #{tpu_custom_call.1} parent=5 // pred_check_branch
        %144 = sbr.rel (%p142) target = $region24
      $region23: #{tpu_custom_call.1} parent=5 // pred_region
        // Predicated region
        $region25: #{tpu_custom_call.1} parent=23 // pred_check
          %p145 = pneg %p36
        $region26: #{tpu_custom_call.1} parent=23 // pred_check_branch
          %147 = sbr.rel (%p145) target = $region28
        $region27: #{tpu_custom_call.1} parent=23 // pred_region
          %s148 = sand.u32 %s26, 1
          %s149 = scalar_lea.sflag [#allocation3], %s148
          %s150 = sand.u32 %s26, 1
          %s151 = smul.addr %s150, 256
          %s152 = scalar_lea.vmem [#allocation2], %s151
          %s153 = smul.u32 16, %s16
          %s155 = ssub.s32 4096, 4096
          %156 = vsyncadd %s149, %s155
          %s157 = smul.addr %s153, 2
          %s158 = smul.addr %s157, 128
          %s159 = scalar_lea.hbm %s0, %s158
          %s160 = sshll.u32 %s152, 4
          %s161 = int_to_ptr.vmem [resolvable:$true] %s160
          %166 = dma.hbm_to_vmem [thread:$0]  %s159, 4096, %s161, %s149, 256, 256, 16
        $region28: #{tpu_custom_call.1} parent=23 // pred_fallthru
          _
      $region24: #{tpu_custom_call.1} parent=5 // pred_fallthru
        _
      %p167 = scmp.le.s32.totalorder 1, %s16
      %p168 = scmp.lt.s32.totalorder %s16, 3
      %p169 = pnand %p167, %p168
      %p170 = pneg %p169
      // Predicated region
      $region29: #{tpu_custom_call.1} parent=5 // pred_check
        _
      $region30: #{tpu_custom_call.1} parent=5 // pred_check_branch
        %172 = sbr.rel (%p169) target = $region32
      $region31: #{tpu_custom_call.1} parent=5 // pred_region
        %s173 = ssub.s32 %s16, 1
        %s174 = sand.u32 %s29, 1
        %s175 = scalar_lea.sflag [#allocation3], %s174
        %s176 = sand.u32 %s29, 1
        %s177 = smul.addr %s176, 256
        %s178 = scalar_lea.vmem [#allocation2], %s177
        // Predicated region
        $region33: #{tpu_custom_call.1} parent=31 // pred_check
          %p179 = pneg %p42
        $region34: #{tpu_custom_call.1} parent=31 // pred_check_branch
          %181 = sbr.rel (%p179) target = $region36
        $region35: #{tpu_custom_call.1} parent=31 // pred_region
          %182 = dma.done %s175, 4096
        $region36: #{tpu_custom_call.1} parent=31 // pred_fallthru
          _
        // Predicated region
        $region37: #{tpu_custom_call.1} parent=31 // pred_check
          %p183 = pneg %p63
        $region38: #{tpu_custom_call.1} parent=31 // pred_check_branch
          %185 = sbr.rel (%p183) target = $region40
        $region39: #{tpu_custom_call.1} parent=31 // pred_region
          %186 = dma.done [#allocation6], 16384
        $region40: #{tpu_custom_call.1} parent=31 // pred_fallthru
          _
        %s187 = sand.u32 %s29, 1
        %s188 = scalar_lea.sflag [#allocation3], %s187
        %s189 = sand.u32 %s29, 1
        %s190 = smul.addr %s189, 256
        %s191 = scalar_lea.vmem [#allocation2], %s190
        %p192 = pneg %p42
        %p193 = pneg %p39
        %p194 = pneg %p63
        %p195 = pneg %p60
        %p196 = pneg %p84
        %p197 = pneg %p81
        %p198 = pneg %p110
        %p199 = pneg %p107
        %s200 = sand.u32 %s97, 1
        %s201 = scalar_lea.sflag [#allocation4], %s200
        %s202 = sand.u32 %s97, 1
        %s203 = smul.addr %s202, 512
        %s204 = scalar_lea.vmem [#allocation7], %s203
        %s205 = smul.u32 16, %s21
        %s206 = smul.u32 16, %s21
        %v207 = vld [vmem:[%s178] sm:$0xff]
        %v208 = vld [vmem:[%s178 + $0x8] sm:$0xff]
        %v209 = vld [vmem:[%s178 + $0x10] sm:$0xff]
        %v210 = vld [vmem:[%s178 + $0x18] sm:$0xff]
        %v211 = vld [vmem:[%s178 + $0x20] sm:$0xff]
        %v212 = vld [vmem:[%s178 + $0x28] sm:$0xff]
        %v213 = vld [vmem:[%s178 + $0x30] sm:$0xff]
        %v214 = vld [vmem:[%s178 + $0x38] sm:$0xff]
        %v215 = vld [vmem:[%s178 + $0x40] sm:$0xff]
        %v216 = vld [vmem:[%s178 + $0x48] sm:$0xff]
        %v217 = vld [vmem:[%s178 + $0x50] sm:$0xff]
        %v218 = vld [vmem:[%s178 + $0x58] sm:$0xff]
        %v219 = vld [vmem:[%s178 + $0x60] sm:$0xff]
        %v220 = vld [vmem:[%s178 + $0x68] sm:$0xff]
        %v221 = vld [vmem:[%s178 + $0x70] sm:$0xff]
        %v222 = vld [vmem:[%s178 + $0x78] sm:$0xff]
        %v223 = vld [vmem:[%s178 + $0x80] sm:$0xff]
        %v224 = vld [vmem:[%s178 + $0x88] sm:$0xff]
        %v225 = vld [vmem:[%s178 + $0x90] sm:$0xff]
        %v226 = vld [vmem:[%s178 + $0x98] sm:$0xff]
        %v227 = vld [vmem:[%s178 + $0xa0] sm:$0xff]
        %v228 = vld [vmem:[%s178 + $0xa8] sm:$0xff]
        %v229 = vld [vmem:[%s178 + $0xb0] sm:$0xff]
        %v230 = vld [vmem:[%s178 + $0xb8] sm:$0xff]
        %v231 = vld [vmem:[%s178 + $0xc0] sm:$0xff]
        %v232 = vld [vmem:[%s178 + $0xc8] sm:$0xff]
        %v233 = vld [vmem:[%s178 + $0xd0] sm:$0xff]
        %v234 = vld [vmem:[%s178 + $0xd8] sm:$0xff]
        %v235 = vld [vmem:[%s178 + $0xe0] sm:$0xff]
        %v236 = vld [vmem:[%s178 + $0xe8] sm:$0xff]
        %v237 = vld [vmem:[%s178 + $0xf0] sm:$0xff]
        %v238 = vld [vmem:[%s178 + $0xf8] sm:$0xff]
        %v239 = vld [vmem:[#allocation5] sm:$0xff]
        %v240 = vld [vmem:[#allocation5 + $0x8] sm:$0xff]
        %v241 = vld [vmem:[#allocation5 + $0x10] sm:$0xff]
        %v242 = vld [vmem:[#allocation5 + $0x18] sm:$0xff]
        %v243 = vld [vmem:[#allocation5 + $0x20] sm:$0xff]
        %v244 = vld [vmem:[#allocation5 + $0x28] sm:$0xff]
        %v245 = vld [vmem:[#allocation5 + $0x30] sm:$0xff]
        %v246 = vld [vmem:[#allocation5 + $0x38] sm:$0xff]
        %v247 = vld [vmem:[#allocation5 + $0x40] sm:$0xff]
        %v248 = vld [vmem:[#allocation5 + $0x48] sm:$0xff]
        %v249 = vld [vmem:[#allocation5 + $0x50] sm:$0xff]
        %v250 = vld [vmem:[#allocation5 + $0x58] sm:$0xff]
        %v251 = vld [vmem:[#allocation5 + $0x60] sm:$0xff]
        %v252 = vld [vmem:[#allocation5 + $0x68] sm:$0xff]
        %v253 = vld [vmem:[#allocation5 + $0x70] sm:$0xff]
        %v254 = vld [vmem:[#allocation5 + $0x78] sm:$0xff]
        %v255 = vld [vmem:[#allocation5 + $0x80] sm:$0xff]
        %v256 = vld [vmem:[#allocation5 + $0x88] sm:$0xff]
        %v257 = vld [vmem:[#allocation5 + $0x90] sm:$0xff]
        %v258 = vld [vmem:[#allocation5 + $0x98] sm:$0xff]
        %v259 = vld [vmem:[#allocation5 + $0xa0] sm:$0xff]
        %v260 = vld [vmem:[#allocation5 + $0xa8] sm:$0xff]
        %v261 = vld [vmem:[#allocation5 + $0xb0] sm:$0xff]
        %v262 = vld [vmem:[#allocation5 + $0xb8] sm:$0xff]
        %v263 = vld [vmem:[#allocation5 + $0xc0] sm:$0xff]
        %v264 = vld [vmem:[#allocation5 + $0xc8] sm:$0xff]
        %v265 = vld [vmem:[#allocation5 + $0xd0] sm:$0xff]
        %v266 = vld [vmem:[#allocation5 + $0xd8] sm:$0xff]
        %v267 = vld [vmem:[#allocation5 + $0xe0] sm:$0xff]
        %v268 = vld [vmem:[#allocation5 + $0xe8] sm:$0xff]
        %v269 = vld [vmem:[#allocation5 + $0xf0] sm:$0xff]
        %v270 = vld [vmem:[#allocation5 + $0xf8] sm:$0xff]
        %v271 = vld [vmem:[#allocation5 + $0x100] sm:$0xff]
        %v272 = vld [vmem:[#allocation5 + $0x108] sm:$0xff]
        %v273 = vld [vmem:[#allocation5 + $0x110] sm:$0xff]
        %v274 = vld [vmem:[#allocation5 + $0x118] sm:$0xff]
        %v275 = vld [vmem:[#allocation5 + $0x120] sm:$0xff]
        %v276 = vld [vmem:[#allocation5 + $0x128] sm:$0xff]
        %v277 = vld [vmem:[#allocation5 + $0x130] sm:$0xff]
        %v278 = vld [vmem:[#allocation5 + $0x138] sm:$0xff]
        %v279 = vld [vmem:[#allocation5 + $0x140] sm:$0xff]
        %v280 = vld [vmem:[#allocation5 + $0x148] sm:$0xff]
        %v281 = vld [vmem:[#allocation5 + $0x150] sm:$0xff]
        %v282 = vld [vmem:[#allocation5 + $0x158] sm:$0xff]
        %v283 = vld [vmem:[#allocation5 + $0x160] sm:$0xff]
        %v284 = vld [vmem:[#allocation5 + $0x168] sm:$0xff]
        %v285 = vld [vmem:[#allocation5 + $0x170] sm:$0xff]
        %v286 = vld [vmem:[#allocation5 + $0x178] sm:$0xff]
        %v287 = vld [vmem:[#allocation5 + $0x180] sm:$0xff]
        %v288 = vld [vmem:[#allocation5 + $0x188] sm:$0xff]
        %v289 = vld [vmem:[#allocation5 + $0x190] sm:$0xff]
        %v290 = vld [vmem:[#allocation5 + $0x198] sm:$0xff]
        %v291 = vld [vmem:[#allocation5 + $0x1a0] sm:$0xff]
        %v292 = vld [vmem:[#allocation5 + $0x1a8] sm:$0xff]
        %v293 = vld [vmem:[#allocation5 + $0x1b0] sm:$0xff]
        %v294 = vld [vmem:[#allocation5 + $0x1b8] sm:$0xff]
        %v295 = vld [vmem:[#allocation5 + $0x1c0] sm:$0xff]
        %v296 = vld [vmem:[#allocation5 + $0x1c8] sm:$0xff]
        %v297 = vld [vmem:[#allocation5 + $0x1d0] sm:$0xff]
        %v298 = vld [vmem:[#allocation5 + $0x1d8] sm:$0xff]
        %v299 = vld [vmem:[#allocation5 + $0x1e0] sm:$0xff]
        %v300 = vld [vmem:[#allocation5 + $0x1e8] sm:$0xff]
        %v301 = vld [vmem:[#allocation5 + $0x1f0] sm:$0xff]
        %v302 = vld [vmem:[#allocation5 + $0x1f8] sm:$0xff]
        %v303 = vld [vmem:[#allocation5 + $0x200] sm:$0xff]
        %v304 = vld [vmem:[#allocation5 + $0x208] sm:$0xff]
        %v305 = vld [vmem:[#allocation5 + $0x210] sm:$0xff]
        %v306 = vld [vmem:[#allocation5 + $0x218] sm:$0xff]
        %v307 = vld [vmem:[#allocation5 + $0x220] sm:$0xff]
        %v308 = vld [vmem:[#allocation5 + $0x228] sm:$0xff]
        %v309 = vld [vmem:[#allocation5 + $0x230] sm:$0xff]
        %v310 = vld [vmem:[#allocation5 + $0x238] sm:$0xff]
        %v311 = vld [vmem:[#allocation5 + $0x240] sm:$0xff]
        %v312 = vld [vmem:[#allocation5 + $0x248] sm:$0xff]
        %v313 = vld [vmem:[#allocation5 + $0x250] sm:$0xff]
        %v314 = vld [vmem:[#allocation5 + $0x258] sm:$0xff]
        %v315 = vld [vmem:[#allocation5 + $0x260] sm:$0xff]
        %v316 = vld [vmem:[#allocation5 + $0x268] sm:$0xff]
        %v317 = vld [vmem:[#allocation5 + $0x270] sm:$0xff]
        %v318 = vld [vmem:[#allocation5 + $0x278] sm:$0xff]
        %v319 = vld [vmem:[#allocation5 + $0x280] sm:$0xff]
        %v320 = vld [vmem:[#allocation5 + $0x288] sm:$0xff]
        %v321 = vld [vmem:[#allocation5 + $0x290] sm:$0xff]
        %v322 = vld [vmem:[#allocation5 + $0x298] sm:$0xff]
        %v323 = vld [vmem:[#allocation5 + $0x2a0] sm:$0xff]
        %v324 = vld [vmem:[#allocation5 + $0x2a8] sm:$0xff]
        %v325 = vld [vmem:[#allocation5 + $0x2b0] sm:$0xff]
        %v326 = vld [vmem:[#allocation5 + $0x2b8] sm:$0xff]
        %v327 = vld [vmem:[#allocation5 + $0x2c0] sm:$0xff]
        %v328 = vld [vmem:[#allocation5 + $0x2c8] sm:$0xff]
        %v329 = vld [vmem:[#allocation5 + $0x2d0] sm:$0xff]
        %v330 = vld [vmem:[#allocation5 + $0x2d8] sm:$0xff]
        %v331 = vld [vmem:[#allocation5 + $0x2e0] sm:$0xff]
        %v332 = vld [vmem:[#allocation5 + $0x2e8] sm:$0xff]
        %v333 = vld [vmem:[#allocation5 + $0x2f0] sm:$0xff]
        %v334 = vld [vmem:[#allocation5 + $0x2f8] sm:$0xff]
        %v335 = vld [vmem:[#allocation5 + $0x300] sm:$0xff]
        %v336 = vld [vmem:[#allocation5 + $0x308] sm:$0xff]
        %v337 = vld [vmem:[#allocation5 + $0x310] sm:$0xff]
        %v338 = vld [vmem:[#allocation5 + $0x318] sm:$0xff]
        %v339 = vld [vmem:[#allocation5 + $0x320] sm:$0xff]
        %v340 = vld [vmem:[#allocation5 + $0x328] sm:$0xff]
        %v341 = vld [vmem:[#allocation5 + $0x330] sm:$0xff]
        %v342 = vld [vmem:[#allocation5 + $0x338] sm:$0xff]
        %v343 = vld [vmem:[#allocation5 + $0x340] sm:$0xff]
        %v344 = vld [vmem:[#allocation5 + $0x348] sm:$0xff]
        %v345 = vld [vmem:[#allocation5 + $0x350] sm:$0xff]
        %v346 = vld [vmem:[#allocation5 + $0x358] sm:$0xff]
        %v347 = vld [vmem:[#allocation5 + $0x360] sm:$0xff]
        %v348 = vld [vmem:[#allocation5 + $0x368] sm:$0xff]
        %v349 = vld [vmem:[#allocation5 + $0x370] sm:$0xff]
        %v350 = vld [vmem:[#allocation5 + $0x378] sm:$0xff]
        %v351 = vld [vmem:[#allocation5 + $0x380] sm:$0xff]
        %v352 = vld [vmem:[#allocation5 + $0x388] sm:$0xff]
        %v353 = vld [vmem:[#allocation5 + $0x390] sm:$0xff]
        %v354 = vld [vmem:[#allocation5 + $0x398] sm:$0xff]
        %v355 = vld [vmem:[#allocation5 + $0x3a0] sm:$0xff]
        %v356 = vld [vmem:[#allocation5 + $0x3a8] sm:$0xff]
        %v357 = vld [vmem:[#allocation5 + $0x3b0] sm:$0xff]
        %v358 = vld [vmem:[#allocation5 + $0x3b8] sm:$0xff]
        %v359 = vld [vmem:[#allocation5 + $0x3c0] sm:$0xff]
        %v360 = vld [vmem:[#allocation5 + $0x3c8] sm:$0xff]
        %v361 = vld [vmem:[#allocation5 + $0x3d0] sm:$0xff]
        %v362 = vld [vmem:[#allocation5 + $0x3d8] sm:$0xff]
        %v363 = vld [vmem:[#allocation5 + $0x3e0] sm:$0xff]
        %v364 = vld [vmem:[#allocation5 + $0x3e8] sm:$0xff]
        %v365 = vld [vmem:[#allocation5 + $0x3f0] sm:$0xff]
        %v366 = vld [vmem:[#allocation5 + $0x3f8] sm:$0xff]
        %v367 = vld [vmem:[%s2] sm:$0xf]
        %v369 = vlaneseq
        %v370 = vshrl.u32 %v369, 7
        %v371 = vsub.s32 0, %v370
        %v372 = vrot.slane %v367, %v371
        %v373 = vlaneseq
        %v374 = vshrl.u32 %v373, 7
        %v375 = vsub.s32 1, %v374
        %v376 = vrot.slane %v367, %v375
        %v377 = vlaneseq
        %v378 = vshrl.u32 %v377, 7
        %v379 = vsub.s32 2, %v378
        %v380 = vrot.slane %v367, %v379
        %v381 = vlaneseq
        %v382 = vshrl.u32 %v381, 7
        %v383 = vsub.s32 3, %v382
        %v384 = vrot.slane %v367, %v383
        %389 = vmatprep.subr.mxu0 %v240
        %390 = vmatpush1.msra.mxu0 %v239
        %391 = vmatprep.subr.mxu0 %v244
        %392 = vmatpush1.msra.mxu0 %v243
        %393 = vmatprep.subr.mxu0 %v248
        %394 = vmatpush1.msra.mxu0 %v247
        %395 = vmatprep.subr.mxu0 %v252
        %396 = vmatpush1.msra.mxu0 %v251
        %397 = vmatprep.subr.mxu0 %v256
        %398 = vmatpush1.msra.mxu0 %v255
        %399 = vmatprep.subr.mxu0 %v260
        %400 = vmatpush1.msra.mxu0 %v259
        %401 = vmatprep.subr.mxu0 %v264
        %402 = vmatpush1.msra.mxu0 %v263
        %403 = vmatprep.subr.mxu0 %v268
        %404 = vmatpush1.msra.mxu0 %v267
        %405 = vmatprep.subr.mxu0 %v272
        %406 = vmatpush1.msra.mxu0 %v271
        %407 = vmatprep.subr.mxu0 %v276
        %408 = vmatpush1.msra.mxu0 %v275
        %409 = vmatprep.subr.mxu0 %v280
        %410 = vmatpush1.msra.mxu0 %v279
        %411 = vmatprep.subr.mxu0 %v284
        %412 = vmatpush1.msra.mxu0 %v283
        %413 = vmatprep.subr.mxu0 %v288
        %414 = vmatpush1.msra.mxu0 %v287
        %415 = vmatprep.subr.mxu0 %v292
        %416 = vmatpush1.msra.mxu0 %v291
        %417 = vmatprep.subr.mxu0 %v296
        %418 = vmatpush1.msra.mxu0 %v295
        %419 = vmatprep.subr.mxu0 %v300
        %420 = vmatpush1.msra.mxu0 %v299
        %421 = vmatprep.subr.mxu0 %v304
        %422 = vmatpush1.msra.mxu0 %v303
        %423 = vmatprep.subr.mxu0 %v308
        %424 = vmatpush1.msra.mxu0 %v307
        %425 = vmatprep.subr.mxu0 %v312
        %426 = vmatpush1.msra.mxu0 %v311
        %427 = vmatprep.subr.mxu0 %v316
        %428 = vmatpush1.msra.mxu0 %v315
        %429 = vmatprep.subr.mxu0 %v320
        %430 = vmatpush1.msra.mxu0 %v319
        %431 = vmatprep.subr.mxu0 %v324
        %432 = vmatpush1.msra.mxu0 %v323
        %433 = vmatprep.subr.mxu0 %v328
        %434 = vmatpush1.msra.mxu0 %v327
        %435 = vmatprep.subr.mxu0 %v332
        %436 = vmatpush1.msra.mxu0 %v331
        %437 = vmatprep.subr.mxu0 %v336
        %438 = vmatpush1.msra.mxu0 %v335
        %439 = vmatprep.subr.mxu0 %v340
        %440 = vmatpush1.msra.mxu0 %v339
        %441 = vmatprep.subr.mxu0 %v344
        %442 = vmatpush1.msra.mxu0 %v343
        %443 = vmatprep.subr.mxu0 %v348
        %444 = vmatpush1.msra.mxu0 %v347
        %445 = vmatprep.subr.mxu0 %v352
        %446 = vmatpush1.msra.mxu0 %v351
        %447 = vmatprep.subr.mxu0 %v356
        %448 = vmatpush1.msra.mxu0 %v355
        %449 = vmatprep.subr.mxu0 %v360
        %450 = vmatpush1.msra.mxu0 %v359
        %451 = vmatprep.subr.mxu0 %v364
        %452 = vmatpush1.msra.mxu0 %v363
        %453 = vmatprep.mubr.f32.mxu0 %v208
        %454 = vmatmul.mubr.f32.gmra.mrb[0].mxu0 %v207
        %v455 = vpop.f32.mrb[0].mxu0
        %v456 = vadd.f32 %v372, %v455
        %v457 = vpop.f32.mrb[0].mxu0
        %v458 = vadd.f32 %v376, %v457
        %459 = vmatprep.mubr.f32.mxu0 %v210
        %460 = vmatmul.mubr.f32.gmra.mrb[0].mxu0 %v209
        %v461 = vpop.f32.mrb[0].mxu0
        %v462 = vadd.f32 %v372, %v461
        %v463 = vpop.f32.mrb[0].mxu0
        %v464 = vadd.f32 %v376, %v463
        %465 = vmatprep.mubr.f32.mxu0 %v212
        %466 = vmatmul.mubr.f32.gmra.mrb[0].mxu0 %v211
        %v467 = vpop.f32.mrb[0].mxu0
        %v468 = vadd.f32 %v372, %v467
        %v469 = vpop.f32.mrb[0].mxu0
        %v470 = vadd.f32 %v376, %v469
        %471 = vmatprep.mubr.f32.mxu0 %v214
        %472 = vmatmul.mubr.f32.gmra.mrb[0].mxu0 %v213
        %v473 = vpop.f32.mrb[0].mxu0
        %v474 = vadd.f32 %v372, %v473
        %v475 = vpop.f32.mrb[0].mxu0
        %v476 = vadd.f32 %v376, %v475
        %477 = vmatprep.mubr.f32.mxu0 %v216
        %478 = vmatmul.mubr.f32.gmra.mrb[0].mxu0 %v215
        %v479 = vpop.f32.mrb[0].mxu0
        %v480 = vadd.f32 %v372, %v479
        %v481 = vpop.f32.mrb[0].mxu0
        %v482 = vadd.f32 %v376, %v481
        %483 = vmatprep.mubr.f32.mxu0 %v218
        %484 = vmatmul.mubr.f32.gmra.mrb[0].mxu0 %v217
        %v485 = vpop.f32.mrb[0].mxu0
        %v486 = vadd.f32 %v372, %v485
        %v487 = vpop.f32.mrb[0].mxu0
        %v488 = vadd.f32 %v376, %v487
        %489 = vmatprep.mubr.f32.mxu0 %v220
        %490 = vmatmul.mubr.f32.gmra.mrb[0].mxu0 %v219
        %v491 = vpop.f32.mrb[0].mxu0
        %v492 = vadd.f32 %v372, %v491
        %v493 = vpop.f32.mrb[0].mxu0
        %v494 = vadd.f32 %v376, %v493
        %495 = vmatprep.mubr.f32.mxu0 %v222
        %496 = vmatmul.mubr.f32.gmra.mrb[0].mxu0 %v221
        %v497 = vpop.f32.mrb[0].mxu0
        %v498 = vadd.f32 %v372, %v497
        %v499 = vpop.f32.mrb[0].mxu0
        %v500 = vadd.f32 %v376, %v499
        %501 = vmatprep.mubr.f32.mxu0 %v224
        %502 = vmatmul.mubr.f32.gmra.mrb[0].mxu0 %v223
        %v503 = vpop.f32.mrb[0].mxu0
        %v504 = vadd.f32 %v372, %v503
        %v505 = vpop.f32.mrb[0].mxu0
        %v506 = vadd.f32 %v376, %v505
        %507 = vmatprep.mubr.f32.mxu0 %v226
        %508 = vmatmul.mubr.f32.gmra.mrb[0].mxu0 %v225
        %v509 = vpop.f32.mrb[0].mxu0
        %v510 = vadd.f32 %v372, %v509
        %v511 = vpop.f32.mrb[0].mxu0
        %v512 = vadd.f32 %v376, %v511
        %513 = vmatprep.mubr.f32.mxu0 %v228
        %514 = vmatmul.mubr.f32.gmra.mrb[0].mxu0 %v227
        %v515 = vpop.f32.mrb[0].mxu0
        %v516 = vadd.f32 %v372, %v515
        %v517 = vpop.f32.mrb[0].mxu0
        %v518 = vadd.f32 %v376, %v517
        %519 = vmatprep.mubr.f32.mxu0 %v230
        %520 = vmatmul.mubr.f32.gmra.mrb[0].mxu0 %v229
        %v521 = vpop.f32.mrb[0].mxu0
        %v522 = vadd.f32 %v372, %v521
        %v523 = vpop.f32.mrb[0].mxu0
        %v524 = vadd.f32 %v376, %v523
        %525 = vmatprep.mubr.f32.mxu0 %v232
        %526 = vmatmul.mubr.f32.gmra.mrb[0].mxu0 %v231
        %v527 = vpop.f32.mrb[0].mxu0
        %v528 = vadd.f32 %v372, %v527
        %v529 = vpop.f32.mrb[0].mxu0
        %v530 = vadd.f32 %v376, %v529
        %531 = vmatprep.mubr.f32.mxu0 %v234
        %532 = vmatmul.mubr.f32.gmra.mrb[0].mxu0 %v233
        %v533 = vpop.f32.mrb[0].mxu0
        %v534 = vadd.f32 %v372, %v533
        %v535 = vpop.f32.mrb[0].mxu0
        %v536 = vadd.f32 %v376, %v535
        %537 = vmatprep.mubr.f32.mxu0 %v236
        %538 = vmatmul.mubr.f32.gmra.mrb[0].mxu0 %v235
        %v539 = vpop.f32.mrb[0].mxu0
        %v540 = vadd.f32 %v372, %v539
        %v541 = vpop.f32.mrb[0].mxu0
        %v542 = vadd.f32 %v376, %v541
        %543 = vmatprep.mubr.f32.mxu0 %v238
        %544 = vmatmul.mubr.f32.gmra.mrb[0].mxu0 %v237
        %v545 = vpop.f32.mrb[0].mxu0
        %v546 = vadd.f32 %v372, %v545
        %v547 = vpop.f32.mrb[0].mxu0
        %v548 = vadd.f32 %v376, %v547
        %549 = vdwg.mxu0
        %550 = vmatprep.subr.mxu0 %v242
        %551 = vmatpush1.msra.mxu0 %v241
        %552 = vmatprep.subr.mxu0 %v246
        %553 = vmatpush1.msra.mxu0 %v245
        %554 = vmatprep.subr.mxu0 %v250
        %555 = vmatpush1.msra.mxu0 %v249
        %556 = vmatprep.subr.mxu0 %v254
        %557 = vmatpush1.msra.mxu0 %v253
        %558 = vmatprep.subr.mxu0 %v258
        %559 = vmatpush1.msra.mxu0 %v257
        %560 = vmatprep.subr.mxu0 %v262
        %561 = vmatpush1.msra.mxu0 %v261
        %562 = vmatprep.subr.mxu0 %v266
        %563 = vmatpush1.msra.mxu0 %v265
        %564 = vmatprep.subr.mxu0 %v270
        %565 = vmatpush1.msra.mxu0 %v269
        %566 = vmatprep.subr.mxu0 %v274
        %567 = vmatpush1.msra.mxu0 %v273
        %568 = vmatprep.subr.mxu0 %v278
        %569 = vmatpush1.msra.mxu0 %v277
        %570 = vmatprep.subr.mxu0 %v282
        %571 = vmatpush1.msra.mxu0 %v281
        %572 = vmatprep.subr.mxu0 %v286
        %573 = vmatpush1.msra.mxu0 %v285
        %574 = vmatprep.subr.mxu0 %v290
        %575 = vmatpush1.msra.mxu0 %v289
        %576 = vmatprep.subr.mxu0 %v294
        %577 = vmatpush1.msra.mxu0 %v293
        %578 = vmatprep.subr.mxu0 %v298
        %579 = vmatpush1.msra.mxu0 %v297
        %580 = vmatprep.subr.mxu0 %v302
        %581 = vmatpush1.msra.mxu0 %v301
        %582 = vmatprep.subr.mxu0 %v306
        %583 = vmatpush1.msra.mxu0 %v305
        %584 = vmatprep.subr.mxu0 %v310
        %585 = vmatpush1.msra.mxu0 %v309
        %586 = vmatprep.subr.mxu0 %v314
        %587 = vmatpush1.msra.mxu0 %v313
        %588 = vmatprep.subr.mxu0 %v318
        %589 = vmatpush1.msra.mxu0 %v317
        %590 = vmatprep.subr.mxu0 %v322
        %591 = vmatpush1.msra.mxu0 %v321
        %592 = vmatprep.subr.mxu0 %v326
        %593 = vmatpush1.msra.mxu0 %v325
        %594 = vmatprep.subr.mxu0 %v330
        %595 = vmatpush1.msra.mxu0 %v329
        %596 = vmatprep.subr.mxu0 %v334
        %597 = vmatpush1.msra.mxu0 %v333
        %598 = vmatprep.subr.mxu0 %v338
        %599 = vmatpush1.msra.mxu0 %v337
        %600 = vmatprep.subr.mxu0 %v342
        %601 = vmatpush1.msra.mxu0 %v341
        %602 = vmatprep.subr.mxu0 %v346
        %603 = vmatpush1.msra.mxu0 %v345
        %604 = vmatprep.subr.mxu0 %v350
        %605 = vmatpush1.msra.mxu0 %v349
        %606 = vmatprep.subr.mxu0 %v354
        %607 = vmatpush1.msra.mxu0 %v353
        %608 = vmatprep.subr.mxu0 %v358
        %609 = vmatpush1.msra.mxu0 %v357
        %610 = vmatprep.subr.mxu0 %v362
        %611 = vmatpush1.msra.mxu0 %v361
        %612 = vmatprep.subr.mxu0 %v366
        %613 = vmatpush1.msra.mxu0 %v365
        %614 = vmatprep.mubr.f32.mxu0 %v208
        %615 = vmatmul.mubr.f32.gmra.mrb[0].mxu0 %v207
        %v616 = vpop.f32.mrb[0].mxu0
        %v617 = vadd.f32 %v380, %v616
        %v618 = vpop.f32.mrb[0].mxu0
        %v619 = vadd.f32 %v384, %v618
        %620 = vmatprep.mubr.f32.mxu0 %v210
        %621 = vmatmul.mubr.f32.gmra.mrb[0].mxu0 %v209
        %v622 = vpop.f32.mrb[0].mxu0
        %v623 = vadd.f32 %v380, %v622
        %v624 = vpop.f32.mrb[0].mxu0
        %v625 = vadd.f32 %v384, %v624
        %626 = vmatprep.mubr.f32.mxu0 %v212
        %627 = vmatmul.mubr.f32.gmra.mrb[0].mxu0 %v211
        %v628 = vpop.f32.mrb[0].mxu0
        %v629 = vadd.f32 %v380, %v628
        %v630 = vpop.f32.mrb[0].mxu0
        %v631 = vadd.f32 %v384, %v630
        %632 = vmatprep.mubr.f32.mxu0 %v214
        %633 = vmatmul.mubr.f32.gmra.mrb[0].mxu0 %v213
        %v634 = vpop.f32.mrb[0].mxu0
        %v635 = vadd.f32 %v380, %v634
        %v636 = vpop.f32.mrb[0].mxu0
        %v637 = vadd.f32 %v384, %v636
        %638 = vmatprep.mubr.f32.mxu0 %v216
        %639 = vmatmul.mubr.f32.gmra.mrb[0].mxu0 %v215
        %v640 = vpop.f32.mrb[0].mxu0
        %v641 = vadd.f32 %v380, %v640
        %v642 = vpop.f32.mrb[0].mxu0
        %v643 = vadd.f32 %v384, %v642
        %644 = vmatprep.mubr.f32.mxu0 %v218
        %645 = vmatmul.mubr.f32.gmra.mrb[0].mxu0 %v217
        %v646 = vpop.f32.mrb[0].mxu0
        %v647 = vadd.f32 %v380, %v646
        %v648 = vpop.f32.mrb[0].mxu0
        %v649 = vadd.f32 %v384, %v648
        %650 = vmatprep.mubr.f32.mxu0 %v220
        %651 = vmatmul.mubr.f32.gmra.mrb[0].mxu0 %v219
        %v652 = vpop.f32.mrb[0].mxu0
        %v653 = vadd.f32 %v380, %v652
        %v654 = vpop.f32.mrb[0].mxu0
        %v655 = vadd.f32 %v384, %v654
        %656 = vmatprep.mubr.f32.mxu0 %v222
        %657 = vmatmul.mubr.f32.gmra.mrb[0].mxu0 %v221
        %v658 = vpop.f32.mrb[0].mxu0
        %v659 = vadd.f32 %v380, %v658
        %v660 = vpop.f32.mrb[0].mxu0
        %v661 = vadd.f32 %v384, %v660
        %662 = vmatprep.mubr.f32.mxu0 %v224
        %663 = vmatmul.mubr.f32.gmra.mrb[0].mxu0 %v223
        %v664 = vpop.f32.mrb[0].mxu0
        %v665 = vadd.f32 %v380, %v664
        %v666 = vpop.f32.mrb[0].mxu0
        %v667 = vadd.f32 %v384, %v666
        %668 = vmatprep.mubr.f32.mxu0 %v226
        %669 = vmatmul.mubr.f32.gmra.mrb[0].mxu0 %v225
        %v670 = vpop.f32.mrb[0].mxu0
        %v671 = vadd.f32 %v380, %v670
        %v672 = vpop.f32.mrb[0].mxu0
        %v673 = vadd.f32 %v384, %v672
        %674 = vmatprep.mubr.f32.mxu0 %v228
        %675 = vmatmul.mubr.f32.gmra.mrb[0].mxu0 %v227
        %v676 = vpop.f32.mrb[0].mxu0
        %v677 = vadd.f32 %v380, %v676
        %v678 = vpop.f32.mrb[0].mxu0
        %v679 = vadd.f32 %v384, %v678
        %680 = vmatprep.mubr.f32.mxu0 %v230
        %681 = vmatmul.mubr.f32.gmra.mrb[0].mxu0 %v229
        %v682 = vpop.f32.mrb[0].mxu0
        %v683 = vadd.f32 %v380, %v682
        %v684 = vpop.f32.mrb[0].mxu0
        %v685 = vadd.f32 %v384, %v684
        %686 = vmatprep.mubr.f32.mxu0 %v232
        %687 = vmatmul.mubr.f32.gmra.mrb[0].mxu0 %v231
        %v688 = vpop.f32.mrb[0].mxu0
        %v689 = vadd.f32 %v380, %v688
        %v690 = vpop.f32.mrb[0].mxu0
        %v691 = vadd.f32 %v384, %v690
        %692 = vmatprep.mubr.f32.mxu0 %v234
        %693 = vmatmul.mubr.f32.gmra.mrb[0].mxu0 %v233
        %v694 = vpop.f32.mrb[0].mxu0
        %v695 = vadd.f32 %v380, %v694
        %v696 = vpop.f32.mrb[0].mxu0
        %v697 = vadd.f32 %v384, %v696
        %698 = vmatprep.mubr.f32.mxu0 %v236
        %699 = vmatmul.mubr.f32.gmra.mrb[0].mxu0 %v235
        %v700 = vpop.f32.mrb[0].mxu0
        %v701 = vadd.f32 %v380, %v700
        %v702 = vpop.f32.mrb[0].mxu0
        %v703 = vadd.f32 %v384, %v702
        %704 = vmatprep.mubr.f32.mxu0 %v238
        %705 = vmatmul.mubr.f32.gmra.mrb[0].mxu0 %v237
        %v706 = vpop.f32.mrb[0].mxu0
        %v707 = vadd.f32 %v380, %v706
        %v708 = vpop.f32.mrb[0].mxu0
        %v709 = vadd.f32 %v384, %v708
        %710 = vdwg.mxu0
        %711 = vst [vmem:[%s204] sm:$0xff] %v456
        %712 = vst [vmem:[%s204 + $0x8] sm:$0xff] %v458
        %713 = vst [vmem:[%s204 + $0x10] sm:$0xff] %v617
        %714 = vst [vmem:[%s204 + $0x18] sm:$0xff] %v619
        %715 = vst [vmem:[%s204 + $0x20] sm:$0xff] %v462
        %716 = vst [vmem:[%s204 + $0x28] sm:$0xff] %v464
        %717 = vst [vmem:[%s204 + $0x30] sm:$0xff] %v623
        %718 = vst [vmem:[%s204 + $0x38] sm:$0xff] %v625
        %719 = vst [vmem:[%s204 + $0x40] sm:$0xff] %v468
        %720 = vst [vmem:[%s204 + $0x48] sm:$0xff] %v470
        %721 = vst [vmem:[%s204 + $0x50] sm:$0xff] %v629
        %722 = vst [vmem:[%s204 + $0x58] sm:$0xff] %v631
        %723 = vst [vmem:[%s204 + $0x60] sm:$0xff] %v474
        %724 = vst [vmem:[%s204 + $0x68] sm:$0xff] %v476
        %725 = vst [vmem:[%s204 + $0x70] sm:$0xff] %v635
        %726 = vst [vmem:[%s204 + $0x78] sm:$0xff] %v637
        %727 = vst [vmem:[%s204 + $0x80] sm:$0xff] %v480
        %728 = vst [vmem:[%s204 + $0x88] sm:$0xff] %v482
        %729 = vst [vmem:[%s204 + $0x90] sm:$0xff] %v641
        %730 = vst [vmem:[%s204 + $0x98] sm:$0xff] %v643
        %731 = vst [vmem:[%s204 + $0xa0] sm:$0xff] %v486
        %732 = vst [vmem:[%s204 + $0xa8] sm:$0xff] %v488
        %733 = vst [vmem:[%s204 + $0xb0] sm:$0xff] %v647
        %734 = vst [vmem:[%s204 + $0xb8] sm:$0xff] %v649
        %735 = vst [vmem:[%s204 + $0xc0] sm:$0xff] %v492
        %736 = vst [vmem:[%s204 + $0xc8] sm:$0xff] %v494
        %737 = vst [vmem:[%s204 + $0xd0] sm:$0xff] %v653
        %738 = vst [vmem:[%s204 + $0xd8] sm:$0xff] %v655
        %739 = vst [vmem:[%s204 + $0xe0] sm:$0xff] %v498
        %740 = vst [vmem:[%s204 + $0xe8] sm:$0xff] %v500
        %741 = vst [vmem:[%s204 + $0xf0] sm:$0xff] %v659
        %742 = vst [vmem:[%s204 + $0xf8] sm:$0xff] %v661
        %743 = vst [vmem:[%s204 + $0x100] sm:$0xff] %v504
        %744 = vst [vmem:[%s204 + $0x108] sm:$0xff] %v506
        %745 = vst [vmem:[%s204 + $0x110] sm:$0xff] %v665
        %746 = vst [vmem:[%s204 + $0x118] sm:$0xff] %v667
        %747 = vst [vmem:[%s204 + $0x120] sm:$0xff] %v510
        %748 = vst [vmem:[%s204 + $0x128] sm:$0xff] %v512
        %749 = vst [vmem:[%s204 + $0x130] sm:$0xff] %v671
        %750 = vst [vmem:[%s204 + $0x138] sm:$0xff] %v673
        %751 = vst [vmem:[%s204 + $0x140] sm:$0xff] %v516
        %752 = vst [vmem:[%s204 + $0x148] sm:$0xff] %v518
        %753 = vst [vmem:[%s204 + $0x150] sm:$0xff] %v677
        %754 = vst [vmem:[%s204 + $0x158] sm:$0xff] %v679
        %755 = vst [vmem:[%s204 + $0x160] sm:$0xff] %v522
        %756 = vst [vmem:[%s204 + $0x168] sm:$0xff] %v524
        %757 = vst [vmem:[%s204 + $0x170] sm:$0xff] %v683
        %758 = vst [vmem:[%s204 + $0x178] sm:$0xff] %v685
        %759 = vst [vmem:[%s204 + $0x180] sm:$0xff] %v528
        %760 = vst [vmem:[%s204 + $0x188] sm:$0xff] %v530
        %761 = vst [vmem:[%s204 + $0x190] sm:$0xff] %v689
        %762 = vst [vmem:[%s204 + $0x198] sm:$0xff] %v691
        %763 = vst [vmem:[%s204 + $0x1a0] sm:$0xff] %v534
        %764 = vst [vmem:[%s204 + $0x1a8] sm:$0xff] %v536
        %765 = vst [vmem:[%s204 + $0x1b0] sm:$0xff] %v695
        %766 = vst [vmem:[%s204 + $0x1b8] sm:$0xff] %v697
        %767 = vst [vmem:[%s204 + $0x1c0] sm:$0xff] %v540
        %768 = vst [vmem:[%s204 + $0x1c8] sm:$0xff] %v542
        %769 = vst [vmem:[%s204 + $0x1d0] sm:$0xff] %v701
        %770 = vst [vmem:[%s204 + $0x1d8] sm:$0xff] %v703
        %771 = vst [vmem:[%s204 + $0x1e0] sm:$0xff] %v546
        %772 = vst [vmem:[%s204 + $0x1e8] sm:$0xff] %v548
        %773 = vst [vmem:[%s204 + $0x1f0] sm:$0xff] %v707
        %774 = vst [vmem:[%s204 + $0x1f8] sm:$0xff] %v709
        %s775 = sand.u32 %s97, 1
        %s776 = scalar_lea.sflag [#allocation4], %s775
        %s777 = sand.u32 %s97, 1
        %s778 = smul.addr %s777, 512
        %s779 = scalar_lea.vmem [#allocation7], %s778
        // Predicated region
        $region41: #{tpu_custom_call.1} parent=31 // pred_check
          %p780 = pneg %p107
        $region42: #{tpu_custom_call.1} parent=31 // pred_check_branch
          %782 = sbr.rel (%p780) target = $region44
        $region43: #{tpu_custom_call.1} parent=31 // pred_region
          %s783 = smul.u32 16, %s21
          %s785 = ssub.s32 8192, 8192
          %786 = vsyncadd %s776, %s785
          %s787 = smul.addr %s783, 4
          %s788 = smul.addr %s787, 128
          %s789 = scalar_lea.hbm %s3, %s788
          %s790 = sshll.u32 %s779, 4
          %s791 = int_to_ptr.vmem [resolvable:$true] %s790
          %796 = dma.vmem_to_hbm [thread:$0]  %s791, 8192, %s789, %s776, 512, 512, 32
        $region44: #{tpu_custom_call.1} parent=31 // pred_fallthru
          _
      $region32: #{tpu_custom_call.1} parent=5 // pred_fallthru
        _
      %p797 = scmp.le.s32.totalorder 2, %s16
      // Predicated region
      $region45: #{tpu_custom_call.1} parent=5 // pred_check
        %p798 = pneg %p797
      $region46: #{tpu_custom_call.1} parent=5 // pred_check_branch
        %800 = sbr.rel (%p798) target = $region48
      $region47: #{tpu_custom_call.1} parent=5 // pred_region
        %s801 = ssub.s32 %s16, 2
        // Predicated region
        $region49: #{tpu_custom_call.1} parent=47 // pred_check
          %p802 = pneg %p113
        $region50: #{tpu_custom_call.1} parent=47 // pred_check_branch
          %804 = sbr.rel (%p802) target = $region52
        $region51: #{tpu_custom_call.1} parent=47 // pred_region
          %s805 = sand.u32 %s98, 1
          %s806 = scalar_lea.sflag [#allocation4], %s805
          %s807 = sand.u32 %s98, 1
          %s808 = smul.addr %s807, 512
          %s809 = scalar_lea.vmem [#allocation7], %s808
          %810 = dma.done %s806, 8192
        $region52: #{tpu_custom_call.1} parent=47 // pred_fallthru
          _
      $region48: #{tpu_custom_call.1} parent=5 // pred_fallthru
        _
    $region6: #{tpu_custom_call.1} parent=1 // loop_footer
      %s20 = sadd.s32 1, %s16
    $region7: #{tpu_custom_call.1} parent=1 // loop_footer_branch
      %15 = sbr.rel target = $region3
    $region8: #{tpu_custom_call.1} parent=1 // loop_exit
      _
    %811 = vsyncpa [#allocation3], 1
    %s812 = scalar_lea.sflag [#allocation3], 1
    %813 = vsyncpa %s812, 1
    %814 = vsyncpa [#allocation6], 1
    %815 = vsyncpa [#allocation4], 1
    %s816 = scalar_lea.sflag [#allocation4], 1
    %817 = vsyncpa %s816, 1

</llo_original>
